<compile_context>
chip_gen: v7x
topology: tpu7x:2x2x1
jax: 0.10.0
libtpu: 0.0.40
codegen_flags: <defaults>
</compile_context>

<pallas_src>
import functools

import jax
import jax.numpy as jnp
from jax.experimental import pallas as pl
from jax.experimental.pallas import tpu as pltpu


# ----------------------------- Pallas kernels ------------------------------

def _conv1_kernel(p_ref, w_ref, qsc_ref, qsh_ref, o_ref):
    # conv1 as one bf16 MXU matmul (f32 accumulation) + fused bn2+relu epilogue in f32;
    # stored bf16 (only consumed by conv2's im2col).
    y = jnp.dot(p_ref[...], w_ref[...], preferred_element_type=jnp.float32)
    o_ref[...] = jnp.maximum(y * qsc_ref[...] + qsh_ref[...], 0.0).astype(o_ref.dtype)


def _conv2_proj_kernel(p_ref, a_ref, w_ref, ws_ref, o_ref):
    # conv2 + 1x1 projection shortcut: two MXU dots into one f32 accumulator
    # (no HBM concatenation of the patch / shortcut slabs).
    y = jnp.dot(p_ref[...], w_ref[...], preferred_element_type=jnp.float32)
    y = y + jnp.dot(a_ref[...], ws_ref[...], preferred_element_type=jnp.float32)
    o_ref[...] = y.astype(o_ref.dtype)


def _conv2_id_kernel(p_ref, w_ref, s_ref, o_ref):
    # conv2 + identity residual add (residual streamed in bf16, upcast in-kernel).
    y = jnp.dot(p_ref[...], w_ref[...], preferred_element_type=jnp.float32)
    o_ref[...] = (y + s_ref[...].astype(jnp.float32)).astype(o_ref.dtype)


# ----------------------------- tiling helpers ------------------------------

def _vmem_budgets():
    """Generation-aware (row-tile budget, vmem_limit ceiling) in bytes."""
    try:
        cap = int(pltpu.get_tpu_info().vmem_capacity_bytes)
    except Exception:
        cap = 64 << 20                      # conservative default: v7x per-core VMEM
    # Leave headroom for compiler scratch / semaphores (matters most on v7x's 64 MiB);
    # on v5e/v6e (128 MiB) this yields ~48 MiB tile budget and ~102 MiB vmem limit.
    return int(cap * 0.38), int(cap * 0.80)


def _choose_cout_tile(kc, cout, wbytes=2):
    # Keep the whole weight resident when small (so the much larger patch matrix is
    # never re-streamed); otherwise tile the output channels.
    if kc * cout * wbytes <= (6 << 20):
        return cout
    for ct in (512, 256, 128):
        if cout % ct == 0:
            return ct
    return cout


def _choose_row_tile(rows, per_row_bytes, resident_bytes, budget):
    """Largest row tile whose double-buffered streams + resident weights fit VMEM."""
    avail = max(budget - 2 * resident_bytes, 1 << 20)
    rb = int(avail // max(2 * per_row_bytes, 1))
    rb = max(16, min(2048, rb))
    if rows <= rb:
        return rows                          # single full-extent tile (always legal)
    return max(128, (rb // 128) * 128)       # large aligned tiles; >=2 tiles since rb<rows


def _compiler_params(vmem_estimate_bytes, vmem_ceiling):
    return pltpu.CompilerParams(
        dimension_semantics=("parallel", "parallel"),
        vmem_limit_bytes=int(min(max(2 * vmem_estimate_bytes, 8 << 20), vmem_ceiling)),
    )


# ----------------------------- pallas_call wrappers ------------------------

def conv1_fused(p, w, qsc, qsh):
    """(rows, kc)bf16 @ (kc, cout)bf16, then relu(y*qsc+qsh) -> bf16."""
    rows, kc = p.shape
    cout = w.shape[1]
    ct = _choose_cout_tile(kc, cout)
    budget, ceiling = _vmem_budgets()
    per_row = kc * 2 + ct * 2
    resident = kc * ct * 2 + 2 * ct * 4
    rb = _choose_row_tile(rows, per_row, resident, budget)
    est = 2 * rb * per_row + 2 * resident

    return pl.pallas_call(
        _conv1_kernel,
        out_shape=jax.ShapeDtypeStruct((rows, cout), jnp.bfloat16),
        grid_spec=pltpu.PrefetchScalarGridSpec(
            num_scalar_prefetch=0,
            grid=(pl.cdiv(rows, rb), cout // ct),   # rows outer, cout inner:
            in_specs=[                              # the patch tile stays resident over j
                pl.BlockSpec((rb, kc), lambda i, j: (i, 0)),
                pl.BlockSpec((kc, ct), lambda i, j: (0, j)),
                pl.BlockSpec((1, ct), lambda i, j: (0, j)),
                pl.BlockSpec((1, ct), lambda i, j: (0, j)),
            ],
            out_specs=pl.BlockSpec((rb, ct), lambda i, j: (i, j)),
        ),
        compiler_params=_compiler_params(est, ceiling),
    )(p, w, qsc.reshape(1, cout).astype(jnp.float32),
      qsh.reshape(1, cout).astype(jnp.float32))


def conv2_proj_fused(p, a, w, ws):
    """conv2 + projection shortcut: dot(p, w) + dot(a, ws) in one kernel (f32 out)."""
    rows, kc = p.shape
    cin = a.shape[1]
    cout = w.shape[1]
    ct = _choose_cout_tile(kc + cin, cout)
    budget, ceiling = _vmem_budgets()
    per_row = (kc + cin) * 2 + ct * 4
    resident = (kc + cin) * ct * 2
    rb = _choose_row_tile(rows, per_row, resident, budget)
    est = 2 * rb * per_row + 2 * resident

    return pl.pallas_call(
        _conv2_proj_kernel,
        out_shape=jax.ShapeDtypeStruct((rows, cout), jnp.float32),
        grid_spec=pltpu.PrefetchScalarGridSpec(
            num_scalar_prefetch=0,
            grid=(pl.cdiv(rows, rb), cout // ct),
            in_specs=[
                pl.BlockSpec((rb, kc), lambda i, j: (i, 0)),
                pl.BlockSpec((rb, cin), lambda i, j: (i, 0)),
                pl.BlockSpec((kc, ct), lambda i, j: (0, j)),
                pl.BlockSpec((cin, ct), lambda i, j: (0, j)),
            ],
            out_specs=pl.BlockSpec((rb, ct), lambda i, j: (i, j)),
        ),
        compiler_params=_compiler_params(est, ceiling),
    )(p, a, w, ws)


def conv2_identity(p, w, s):
    """conv2 matmul + identity residual add (residual streamed bf16, f32 out)."""
    rows, kc = p.shape
    cout = w.shape[1]
    ct = _choose_cout_tile(kc, cout)
    budget, ceiling = _vmem_budgets()
    per_row = kc * 2 + ct * 2 + ct * 4
    resident = kc * ct * 2
    rb = _choose_row_tile(rows, per_row, resident, budget)
    est = 2 * rb * per_row + 2 * resident

    return pl.pallas_call(
        _conv2_id_kernel,
        out_shape=jax.ShapeDtypeStruct((rows, cout), jnp.float32),
        grid_spec=pltpu.PrefetchScalarGridSpec(
            num_scalar_prefetch=0,
            grid=(pl.cdiv(rows, rb), cout // ct),
            in_specs=[
                pl.BlockSpec((rb, kc), lambda i, j: (i, 0)),
                pl.BlockSpec((kc, ct), lambda i, j: (0, j)),
                pl.BlockSpec((rb, ct), lambda i, j: (i, j)),
            ],
            out_specs=pl.BlockSpec((rb, ct), lambda i, j: (i, j)),
        ),
        compiler_params=_compiler_params(est, ceiling),
    )(p, w, s)


# ----------------------------- glue (plain JAX) ----------------------------

def im2col(x_nhwc, k, stride, pad):
    """Extract k x k patches (column order: kh, kw, c) -> (N*Ho*Wo, k*k*C)."""
    N, H, W, C = x_nhwc.shape
    xp = jnp.pad(x_nhwc, ((0, 0), (pad, pad), (pad, pad), (0, 0)))
    Ho = (H + 2 * pad - k) // stride + 1
    Wo = (W + 2 * pad - k) // stride + 1
    cols = []
    for kh in range(k):
        for kw in range(k):
            cols.append(xp[:, kh:kh + (Ho - 1) * stride + 1:stride,
                              kw:kw + (Wo - 1) * stride + 1:stride, :])
    return jnp.concatenate(cols, axis=-1).reshape(N * Ho * Wo, k * k * C), Ho, Wo


def _fold_bn(gamma, beta, mean, var, eps=1e-5):
    scale = gamma / jnp.sqrt(var + eps)
    shift = beta - mean * scale
    return scale, shift


def _w_to_mat(w_oihw):
    # torch conv weight (O, I, kh, kw) -> im2col matmul weight (kh*kw*I, O)
    o, i, kh, kw = w_oihw.shape
    return jnp.transpose(w_oihw, (2, 3, 1, 0)).reshape(kh * kw * i, o)


def preact_basic_block_forward(params, x_nchw, stride, kernel_size=3):
    N, Cin, H, W = x_nchw.shape
    Cout = params["conv1_w"].shape[0]
    k = kernel_size
    pad = k // 2

    # TODO(synk): keep activations NHWC (and bf16) across blocks to drop this transpose.
    x = jnp.transpose(x_nchw, (0, 2, 3, 1)).astype(jnp.float32)       # NHWC

    # a1 = relu(bn1(x)) computed ONCE (fuses with the transpose above in XLA);
    # zero-padding a1 in im2col then matches the reference exactly (incl. gamma==0).
    s1, b1 = _fold_bn(params["bn1_gamma"], params["bn1_beta"],
                      params["bn1_mean"], params["bn1_var"])
    a1 = jnp.maximum(x * s1 + b1, 0.0).astype(jnp.bfloat16)

    # ---- conv1 (stride) with fused bn2+relu epilogue ----
    p1, Ho, Wo = im2col(a1, k, stride, pad)                           # bf16
    w1 = _w_to_mat(params["conv1_w"]).astype(jnp.bfloat16)
    s2, b2 = _fold_bn(params["bn2_gamma"], params["bn2_beta"],
                      params["bn2_mean"], params["bn2_var"])
    y1 = conv1_fused(p1, w1, s2, b2).reshape(N, Ho, Wo, Cout)         # bf16

    # ---- conv2 (stride 1) + shortcut ----
    p2, _, _ = im2col(y1, k, 1, pad)                                  # bf16
    w2 = _w_to_mat(params["conv2_w"]).astype(jnp.bfloat16)

    has_shortcut = (stride != 1) or (Cin != Cout)
    if has_shortcut:
        # projection shortcut = conv1x1(relu(bn1(x)))[::stride], fused as a 2nd dot.
        a1s = a1[:, ::stride, ::stride, :][:, :Ho, :Wo, :].reshape(N * Ho * Wo, Cin)
        wsc = _w_to_mat(params["shortcut_w"]).astype(jnp.bfloat16)    # (Cin, Cout)
        out2d = conv2_proj_fused(p2, a1s, w2, wsc)
    else:
        sc = x.astype(jnp.bfloat16).reshape(N * H * W, Cout)          # identity = raw x
        out2d = conv2_identity(p2, w2, sc)

    out = out2d.reshape(N, Ho, Wo, Cout)
    return jnp.transpose(out, (0, 3, 1, 2))                           # back to NCHW


# ----------------------------- pure-JAX reference ---------------------------

def reference_forward(params, x_nchw, stride, kernel_size=3):
    eps = 1e-5

    def bn(x, g, b, m, v):
        return (x - m) / jnp.sqrt(v + eps) * g + b

    def conv(x, w_oihw, s):
        w_hwio = jnp.transpose(w_oihw, (2, 3, 1, 0))
        ph, pw = w_oihw.shape[2] // 2, w_oihw.shape[3] // 2
        return jax.lax.conv_general_dilated(
            x, w_hwio, (s, s), padding=[(ph, ph), (pw, pw)],
            dimension_numbers=("NHWC", "HWIO", "NHWC"))

    x = jnp.transpose(x_nchw, (0, 2, 3, 1)).astype(jnp.float32)
    a1 = jax.nn.relu(bn(x, params["bn1_gamma"], params["bn1_beta"],
                        params["bn1_mean"], params["bn1_var"]))
    Cin = x.shape[-1]
    Cout = params["conv1_w"].shape[0]
    if stride != 1 or Cin != Cout:
        shortcut = conv(a1, params["shortcut_w"], stride)
    else:
        shortcut = x
    out = conv(a1, params["conv1_w"], stride)
    out = jax.nn.relu(bn(out, params["bn2_gamma"], params["bn2_beta"],
                         params["bn2_mean"], params["bn2_var"]))
    out = conv(out, params["conv2_w"], 1)
    return jnp.transpose(out + shortcut, (0, 3, 1, 2))


# ----------------------------- main -----------------------------------------

def make_params(key, in_planes, planes, stride, kernel_size=3):
    ks = jax.random.split(key, 11)
    p = {
        "bn1_gamma": 1.0 + 0.1 * jax.random.normal(ks[0], (in_planes,), jnp.float32),
        "bn1_beta": 0.1 * jax.random.normal(ks[1], (in_planes,), jnp.float32),
        "bn1_mean": 0.1 * jax.random.normal(ks[2], (in_planes,), jnp.float32),
        "bn1_var": jnp.abs(jax.random.normal(ks[3], (in_planes,), jnp.float32)) + 0.5,
        "conv1_w": 0.1 * jax.random.normal(ks[4], (planes, in_planes, kernel_size, kernel_size), jnp.float32),
        "bn2_gamma": 1.0 + 0.1 * jax.random.normal(ks[5], (planes,), jnp.float32),
        "bn2_beta": 0.1 * jax.random.normal(ks[6], (planes,), jnp.float32),
        "bn2_mean": 0.1 * jax.random.normal(ks[7], (planes,), jnp.float32),
        "bn2_var": jnp.abs(jax.random.normal(ks[8], (planes,), jnp.float32)) + 0.5,
        "conv2_w": 0.1 * jax.random.normal(ks[9], (planes, planes, kernel_size, kernel_size), jnp.float32),
    }
    if stride != 1 or in_planes != planes:
        p["shortcut_w"] = 0.1 * jax.random.normal(ks[10], (planes, in_planes, 1, 1), jnp.float32)
    return p


def _check(in_planes, planes, stride, N=2, H=16, W=16, seed=0):
    key = jax.random.PRNGKey(seed)
    kx, kp = jax.random.split(key)
    x = jax.random.normal(kx, (N, in_planes, H, W), jnp.float32)
    params = make_params(kp, in_planes, planes, stride)

    fwd = jax.jit(functools.partial(preact_basic_block_forward, stride=stride))
    out = jax.block_until_ready(fwd(params, x))
    ref = jax.block_until_ready(reference_forward(params, x, stride))

    assert out.shape == ref.shape, (out.shape, ref.shape)
    err = float(jnp.max(jnp.abs(out - ref)))
    # bf16 matmul streams (f32 accumulation) + bf16 residual vs the f32 reference
    assert jnp.allclose(out, ref, atol=4e-2, rtol=4e-2), err


if __name__ == "__main__":
    # projection-shortcut path (stride 2, channel change)
    _check(in_planes=4, planes=8, stride=2)
    # identity-shortcut path (stride 1, same channels)
    _check(in_planes=8, planes=8, stride=1)

    print("KERNEL_OK")
</pallas_src>

<mosaic_0001>
module attributes {stable_mosaic.version = 11 : i64} {
  func.func @_conv1_kernel(%arg0: i32, %arg1: i32, %arg2: memref<128x36xbf16, #tpu.memory_space<vmem>>, %arg3: memref<36x8xbf16, #tpu.memory_space<vmem>>, %arg4: memref<1x8xf32, #tpu.memory_space<vmem>>, %arg5: memref<1x8xf32, #tpu.memory_space<vmem>>, %arg6: memref<128x8xbf16, #tpu.memory_space<vmem>>) attributes {dimension_semantics = [#tpu.dimension_semantics<parallel>, #tpu.dimension_semantics<parallel>], iteration_bounds = array<i64: 1, 1>, scalar_prefetch = 0 : i64, scratch_operands = 0 : i64, tpu.core_type = #tpu.core_type<tc>, window_params = [{transform_indices = @transform_0, window_bounds = array<i64: 128, 36>}, {transform_indices = @transform_1, window_bounds = array<i64: 36, 8>}, {transform_indices = @transform_2, window_bounds = array<i64: 1, 8>}, {transform_indices = @transform_3, window_bounds = array<i64: 1, 8>}, {transform_indices = @transform_4, window_bounds = array<i64: 128, 8>}]} {
    %c0 = arith.constant 0 : index
    %c0_0 = arith.constant 0 : index
    %0 = vector.load %arg2[%c0, %c0_0] : memref<128x36xbf16, #tpu.memory_space<vmem>>, vector<128x36xbf16>
    %c0_1 = arith.constant 0 : index
    %c0_2 = arith.constant 0 : index
    %1 = vector.load %arg3[%c0_1, %c0_2] : memref<36x8xbf16, #tpu.memory_space<vmem>>, vector<36x8xbf16>
    %cst = arith.constant dense<0.000000e+00> : vector<128x8xf32>
    %2 = tpu.matmul %0, %1, %cst {dimension_numbers = #tpu.dot_dimension_numbers<[1], [0], [0], [1], [0, 0, 1, 1], [], []>} : vector<128x36xbf16>, vector<36x8xbf16>, vector<128x8xf32> -> vector<128x8xf32>
    %c0_3 = arith.constant 0 : index
    %c0_4 = arith.constant 0 : index
    %3 = vector.load %arg4[%c0_3, %c0_4] : memref<1x8xf32, #tpu.memory_space<vmem>>, vector<1x8xf32>
    %4 = vector.broadcast %3 : vector<1x8xf32> to vector<128x8xf32>
    %5 = arith.mulf %2, %4 : vector<128x8xf32>
    %c0_5 = arith.constant 0 : index
    %c0_6 = arith.constant 0 : index
    %6 = vector.load %arg5[%c0_5, %c0_6] : memref<1x8xf32, #tpu.memory_space<vmem>>, vector<1x8xf32>
    %7 = vector.broadcast %6 : vector<1x8xf32> to vector<128x8xf32>
    %8 = arith.addf %5, %7 : vector<128x8xf32>
    %cst_7 = arith.constant 0.000000e+00 : f32
    %9 = vector.broadcast %cst_7 : f32 to vector<128x8xf32>
    %10 = arith.maximumf %8, %9 : vector<128x8xf32>
    %11 = arith.truncf %10 : vector<128x8xf32> to vector<128x8xbf16>
    %c0_8 = arith.constant 0 : index
    %c0_9 = arith.constant 0 : index
    %12 = vector.load %arg6[%c0_8, %c0_9] : memref<128x8xbf16, #tpu.memory_space<vmem>>, vector<128x8xbf16>
    tpu.vector_store %arg6[%c0_8, %c0_9], %11 {strides = array<i32>} : memref<128x8xbf16, #tpu.memory_space<vmem>>, vector<128x8xbf16>,
    return
  }
  func.func @transform_0(%arg0: i32, %arg1: i32) -> (i32, i32) {
    %c0_i32 = arith.constant 0 : i32
    %c0_i32_0 = arith.constant 0 : i32
    return %arg0, %c0_i32 : i32, i32
  }
  func.func @transform_1(%arg0: i32, %arg1: i32) -> (i32, i32) {
    %c0_i32 = arith.constant 0 : i32
    %c0_i32_0 = arith.constant 0 : i32
    return %c0_i32, %arg1 : i32, i32
  }
  func.func @transform_2(%arg0: i32, %arg1: i32) -> (i32, i32) {
    %c0_i32 = arith.constant 0 : i32
    %c0_i32_0 = arith.constant 0 : i32
    return %c0_i32, %arg1 : i32, i32
  }
  func.func @transform_3(%arg0: i32, %arg1: i32) -> (i32, i32) {
    %c0_i32 = arith.constant 0 : i32
    %c0_i32_0 = arith.constant 0 : i32
    return %c0_i32, %arg1 : i32, i32
  }
  func.func @transform_4(%arg0: i32, %arg1: i32) -> (i32, i32) {
    %c0_i32 = arith.constant 0 : i32
    return %arg0, %arg1 : i32, i32
  }
}

module attributes {stable_mosaic.version = 11 : i64} {
  func.func @_conv2_proj_kernel(%arg0: i32, %arg1: i32, %arg2: memref<128x72xbf16, #tpu.memory_space<vmem>>, %arg3: memref<128x4xbf16, #tpu.memory_space<vmem>>, %arg4: memref<72x8xbf16, #tpu.memory_space<vmem>>, %arg5: memref<4x8xbf16, #tpu.memory_space<vmem>>, %arg6: memref<128x8xf32, #tpu.memory_space<vmem>>) attributes {dimension_semantics = [#tpu.dimension_semantics<parallel>, #tpu.dimension_semantics<parallel>], iteration_bounds = array<i64: 1, 1>, scalar_prefetch = 0 : i64, scratch_operands = 0 : i64, tpu.core_type = #tpu.core_type<tc>, window_params = [{transform_indices = @transform_0, window_bounds = array<i64: 128, 72>}, {transform_indices = @transform_1, window_bounds = array<i64: 128, 4>}, {transform_indices = @transform_2, window_bounds = array<i64: 72, 8>}, {transform_indices = @transform_3, window_bounds = array<i64: 4, 8>}, {transform_indices = @transform_4, window_bounds = array<i64: 128, 8>}]} {
    %c0 = arith.constant 0 : index
    %c0_0 = arith.constant 0 : index
    %0 = vector.load %arg2[%c0, %c0_0] : memref<128x72xbf16, #tpu.memory_space<vmem>>, vector<128x72xbf16>
    %c0_1 = arith.constant 0 : index
    %c0_2 = arith.constant 0 : index
    %1 = vector.load %arg4[%c0_1, %c0_2] : memref<72x8xbf16, #tpu.memory_space<vmem>>, vector<72x8xbf16>
    %cst = arith.constant dense<0.000000e+00> : vector<128x8xf32>
    %2 = tpu.matmul %0, %1, %cst {dimension_numbers = #tpu.dot_dimension_numbers<[1], [0], [0], [1], [0, 0, 1, 1], [], []>} : vector<128x72xbf16>, vector<72x8xbf16>, vector<128x8xf32> -> vector<128x8xf32>
    %c0_3 = arith.constant 0 : index
    %c0_4 = arith.constant 0 : index
    %3 = vector.load %arg3[%c0_3, %c0_4] : memref<128x4xbf16, #tpu.memory_space<vmem>>, vector<128x4xbf16>
    %c0_5 = arith.constant 0 : index
    %c0_6 = arith.constant 0 : index
    %4 = vector.load %arg5[%c0_5, %c0_6] : memref<4x8xbf16, #tpu.memory_space<vmem>>, vector<4x8xbf16>
    %cst_7 = arith.constant dense<0.000000e+00> : vector<128x8xf32>
    %5 = tpu.matmul %3, %4, %cst_7 {dimension_numbers = #tpu.dot_dimension_numbers<[1], [0], [0], [1], [0, 0, 1, 1], [], []>} : vector<128x4xbf16>, vector<4x8xbf16>, vector<128x8xf32> -> vector<128x8xf32>
    %6 = arith.addf %2, %5 : vector<128x8xf32>
    %c0_8 = arith.constant 0 : index
    %c0_9 = arith.constant 0 : index
    %7 = vector.load %arg6[%c0_8, %c0_9] : memref<128x8xf32, #tpu.memory_space<vmem>>, vector<128x8xf32>
    tpu.vector_store %arg6[%c0_8, %c0_9], %6 {strides = array<i32>} : memref<128x8xf32, #tpu.memory_space<vmem>>, vector<128x8xf32>,
    return
  }
  func.func @transform_0(%arg0: i32, %arg1: i32) -> (i32, i32) {
    %c0_i32 = arith.constant 0 : i32
    %c0_i32_0 = arith.constant 0 : i32
    return %arg0, %c0_i32 : i32, i32
  }
  func.func @transform_1(%arg0: i32, %arg1: i32) -> (i32, i32) {
    %c0_i32 = arith.constant 0 : i32
    %c0_i32_0 = arith.constant 0 : i32
    return %arg0, %c0_i32 : i32, i32
  }
  func.func @transform_2(%arg0: i32, %arg1: i32) -> (i32, i32) {
    %c0_i32 = arith.constant 0 : i32
    %c0_i32_0 = arith.constant 0 : i32
    return %c0_i32, %arg1 : i32, i32
  }
  func.func @transform_3(%arg0: i32, %arg1: i32) -> (i32, i32) {
    %c0_i32 = arith.constant 0 : i32
    %c0_i32_0 = arith.constant 0 : i32
    return %c0_i32, %arg1 : i32, i32
  }
  func.func @transform_4(%arg0: i32, %arg1: i32) -> (i32, i32) {
    %c0_i32 = arith.constant 0 : i32
    return %arg0, %arg1 : i32, i32
  }
}

</mosaic_0001>

<llo_original>
// kernel: preact_basic_block_forward.2
$region0: #{preact_basic_block_forward.2}
  #allocation0 [shape = 'u32[]', space=smem, size = 0x4, offset = 0x4, fixed_abs, tag = 'smem constant byte address 0x4 - core index']
  #allocation1 [shape = 'u32[144,128]{1,0:T(1,128)}', space=vmem, size = 0x12000, scoped, tag = 'internal scratch']
  %s0 = inlined_call_operand.vmem [shape: bf16[128,36], index: 0, kind: input, shape index: {}]
  %s1 = inlined_call_operand.vmem [shape: bf16[36,8], index: 1, kind: input, shape index: {}]
  %s2 = inlined_call_operand.vmem [shape: f32[1,8], index: 2, kind: input, shape index: {}]
  %s3 = inlined_call_operand.vmem [shape: f32[1,8], index: 3, kind: input, shape index: {}]
  %s4 = inlined_call_operand.vmem [shape: bf16[128,8], index: 4, kind: output, shape index: {}]
  %s5 = sld [smem:[#allocation0]]
  $region26: #{preact_basic_block_forward.2} parent=0
    _
  %s7 = ssub.s32 1, %s5
  %s8 = scalar_select 0, %s7, %s5
  // Predicated region
  $region2: #{preact_basic_block_forward.2} parent=0 // pred_check
    _
  $region3: #{preact_basic_block_forward.2} parent=0 // pred_check_branch
    %10 = sbr.rel (0) target = $region5
  $region4: #{preact_basic_block_forward.2} parent=0 // pred_region
    _
  $region5: #{preact_basic_block_forward.2} parent=0 // pred_fallthru
    _
  // Predicated region
  $region6: #{preact_basic_block_forward.2} parent=0 // pred_check
    _
  $region7: #{preact_basic_block_forward.2} parent=0 // pred_check_branch
    %12 = sbr.rel (0) target = $region9
  $region8: #{preact_basic_block_forward.2} parent=0 // pred_region
    _
  $region9: #{preact_basic_block_forward.2} parent=0 // pred_fallthru
    _
  // Predicated region
  $region10: #{preact_basic_block_forward.2} parent=0 // pred_check
    _
  $region11: #{preact_basic_block_forward.2} parent=0 // pred_check_branch
    %14 = sbr.rel (0) target = $region13
  $region12: #{preact_basic_block_forward.2} parent=0 // pred_region
    _
  $region13: #{preact_basic_block_forward.2} parent=0 // pred_fallthru
    _
  // Predicated region
  $region14: #{preact_basic_block_forward.2} parent=0 // pred_check
    _
  $region15: #{preact_basic_block_forward.2} parent=0 // pred_check_branch
    %16 = sbr.rel (0) target = $region17
  $region16: #{preact_basic_block_forward.2} parent=0 // pred_region
    _
  $region17: #{preact_basic_block_forward.2} parent=0 // pred_fallthru
    _
  %v18 = vld [vmem:[%s0] sm:$0xf]
  %v19 = vld [vmem:[%s0 + $0x4] sm:$0xf]
  %v20 = vld [vmem:[%s0 + $0x8] sm:$0xf]
  %v21 = vld [vmem:[%s0 + $0xc] sm:$0xf]
  %v22 = vld [vmem:[%s0 + $0x10] sm:$0xf]
  %v23 = vld [vmem:[%s0 + $0x14] sm:$0xf]
  %v24 = vld [vmem:[%s0 + $0x18] sm:$0xf]
  %v25 = vld [vmem:[%s0 + $0x1c] sm:$0xf]
  %v26 = vld [vmem:[%s0 + $0x20] sm:$0xf]
  %v27 = vld [vmem:[%s0 + $0x24] sm:$0xf]
  %v28 = vld [vmem:[%s0 + $0x28] sm:$0xf]
  %v29 = vld [vmem:[%s0 + $0x2c] sm:$0xf]
  %v30 = vld [vmem:[%s0 + $0x30] sm:$0xf]
  %v31 = vld [vmem:[%s0 + $0x34] sm:$0xf]
  %v32 = vld [vmem:[%s0 + $0x38] sm:$0xf]
  %v33 = vld [vmem:[%s0 + $0x3c] sm:$0xf]
  %v34 = vld [vmem:[%s1] sm:$0xf]
  %v35 = vld [vmem:[%s1 + $0x4] sm:$0xf]
  %v36 = vld [vmem:[%s1 + $0x8] sm:$0xf]
  %v37 = vld [vmem:[%s1 + $0xc] sm:$0xf]
  %v38 = vld [vmem:[%s1 + $0x10] sm:$0x3]
  %v55 = vunpack.c.l.b16 %v18
  %v56 = vunpack.c.l.b16 %v19
  %v57 = vunpack.c.l.b16 %v20
  %v58 = vunpack.c.l.b16 %v21
  %v59 = vunpack.c.l.b16 %v22
  %v60 = vunpack.c.l.b16 %v23
  %v61 = vunpack.c.l.b16 %v24
  %v62 = vunpack.c.l.b16 %v25
  %v63 = vunpack.c.l.b16 %v26
  %v64 = vunpack.c.l.b16 %v27
  %v65 = vunpack.c.l.b16 %v28
  %v66 = vunpack.c.l.b16 %v29
  %v67 = vunpack.c.l.b16 %v30
  %v68 = vunpack.c.l.b16 %v31
  %v69 = vunpack.c.l.b16 %v32
  %v70 = vunpack.c.l.b16 %v33
  %v71 = vpack.c.b16 %v56, %v55
  %v72 = vpack.c.b16 %v58, %v57
  %v73 = vpack.c.b16 %v60, %v59
  %v74 = vpack.c.b16 %v62, %v61
  %v75 = vpack.c.b16 %v64, %v63
  %v76 = vpack.c.b16 %v66, %v65
  %v77 = vpack.c.b16 %v68, %v67
  %v78 = vpack.c.b16 %v70, %v69
  %v84 = vunpack.c.l.b16 %v34
  %v85 = vunpack.c.l.b16 %v35
  %v86 = vunpack.c.l.b16 %v36
  %v87 = vunpack.c.l.b16 %v37
  %v88 = vunpack.c.l.b16 %v38
  %v89 = vpack.c.b16 %v85, %v84
  %v90 = vpack.c.b16 %v87, %v86
  %v91 = vpack.c.b16 %v88, %v88
  %vm94 = vcmask 293888
  %v96 = vsel %vm94, %v71, 0
  %v99 = vsel %vm94, %v72, 0
  %v102 = vsel %vm94, %v73, 0
  %v105 = vsel %vm94, %v74, 0
  %v108 = vsel %vm94, %v75, 0
  %v111 = vsel %vm94, %v76, 0
  %v114 = vsel %vm94, %v77, 0
  %v117 = vsel %vm94, %v78, 0
  %vm119 = vcmask 1041408
  %v121 = vsel %vm119, %v91, 0
  %123 = vmatprep.subr.bf16.mxu0 0
  %124 = vmatpush1.bf16.msra.mxu0 %v89
  %125 = vmatprep.subr.bf16.mxu0 0
  %126 = vmatpush1.bf16.msra.mxu0 %v90
  %127 = vmatprep.subr.bf16.mxu0 0
  %128 = vmatpush1.bf16.msra.mxu0 %v121
  %129 = vmatprep.subr.bf16.mxu0 0
  %130 = vmatpush1.bf16.msra.mxu0 0
  %131 = vmatprep.subr.bf16.mxu0 0
  %132 = vmatpush1.bf16.msra.mxu0 0
  %133 = vmatprep.subr.bf16.mxu0 0
  %134 = vmatpush1.bf16.msra.mxu0 0
  %135 = vmatprep.subr.bf16.mxu0 0
  %136 = vmatpush1.bf16.msra.mxu0 0
  %137 = vmatprep.subr.bf16.mxu0 0
  %138 = vmatpush1.bf16.msra.mxu0 0
  %139 = vmatprep.subr.bf16.mxu0 0
  %140 = vmatpush1.bf16.msra.mxu0 0
  %141 = vmatprep.subr.bf16.mxu0 0
  %142 = vmatpush1.bf16.msra.mxu0 0
  %143 = vmatprep.subr.bf16.mxu0 0
  %144 = vmatpush1.bf16.msra.mxu0 0
  %145 = vmatprep.subr.bf16.mxu0 0
  %146 = vmatpush1.bf16.msra.mxu0 0
  %147 = vmatprep.subr.bf16.mxu0 0
  %148 = vmatpush1.bf16.msra.mxu0 0
  %149 = vmatprep.subr.bf16.mxu0 0
  %150 = vmatpush1.bf16.msra.mxu0 0
  %151 = vmatprep.subr.bf16.mxu0 0
  %152 = vmatpush1.bf16.msra.mxu0 0
  %153 = vmatprep.subr.bf16.mxu0 0
  %154 = vmatpush1.bf16.msra.mxu0 0
  %155 = vmatprep.mubr.bf16.mxu0 0
  %156 = vmatmul.mubr.bf16.gmra.mrb[0].mxu0 %v96
  %v157 = vpop.f32.mrb[0].mxu0
  %v158 = vadd.f32 0.0, %v157
  %v159 = vpop.f32.mrb[0].mxu0
  %v160 = vpop.f32.mrb[0].mxu0
  %v161 = vadd.f32 0.0, %v160
  %v162 = vpop.f32.mrb[0].mxu0
  %163 = vmatprep.mubr.bf16.mxu0 0
  %164 = vmatmul.mubr.bf16.gmra.mrb[0].mxu0 %v99
  %v165 = vpop.f32.mrb[0].mxu0
  %v166 = vadd.f32 0.0, %v165
  %v167 = vpop.f32.mrb[0].mxu0
  %v168 = vpop.f32.mrb[0].mxu0
  %v169 = vadd.f32 0.0, %v168
  %v170 = vpop.f32.mrb[0].mxu0
  %171 = vmatprep.mubr.bf16.mxu0 0
  %172 = vmatmul.mubr.bf16.gmra.mrb[0].mxu0 %v102
  %v173 = vpop.f32.mrb[0].mxu0
  %v174 = vadd.f32 0.0, %v173
  %v175 = vpop.f32.mrb[0].mxu0
  %v176 = vpop.f32.mrb[0].mxu0
  %v177 = vadd.f32 0.0, %v176
  %v178 = vpop.f32.mrb[0].mxu0
  %179 = vmatprep.mubr.bf16.mxu0 0
  %180 = vmatmul.mubr.bf16.gmra.mrb[0].mxu0 %v105
  %v181 = vpop.f32.mrb[0].mxu0
  %v182 = vadd.f32 0.0, %v181
  %v183 = vpop.f32.mrb[0].mxu0
  %v184 = vpop.f32.mrb[0].mxu0
  %v185 = vadd.f32 0.0, %v184
  %v186 = vpop.f32.mrb[0].mxu0
  %187 = vmatprep.mubr.bf16.mxu0 0
  %188 = vmatmul.mubr.bf16.gmra.mrb[0].mxu0 %v108
  %v189 = vpop.f32.mrb[0].mxu0
  %v190 = vadd.f32 0.0, %v189
  %v191 = vpop.f32.mrb[0].mxu0
  %v192 = vpop.f32.mrb[0].mxu0
  %v193 = vadd.f32 0.0, %v192
  %v194 = vpop.f32.mrb[0].mxu0
  %195 = vmatprep.mubr.bf16.mxu0 0
  %196 = vmatmul.mubr.bf16.gmra.mrb[0].mxu0 %v111
  %v197 = vpop.f32.mrb[0].mxu0
  %v198 = vadd.f32 0.0, %v197
  %v199 = vpop.f32.mrb[0].mxu0
  %v200 = vpop.f32.mrb[0].mxu0
  %v201 = vadd.f32 0.0, %v200
  %v202 = vpop.f32.mrb[0].mxu0
  %203 = vmatprep.mubr.bf16.mxu0 0
  %204 = vmatmul.mubr.bf16.gmra.mrb[0].mxu0 %v114
  %v205 = vpop.f32.mrb[0].mxu0
  %v206 = vadd.f32 0.0, %v205
  %v207 = vpop.f32.mrb[0].mxu0
  %v208 = vpop.f32.mrb[0].mxu0
  %v209 = vadd.f32 0.0, %v208
  %v210 = vpop.f32.mrb[0].mxu0
  %211 = vmatprep.mubr.bf16.mxu0 0
  %212 = vmatmul.mubr.bf16.gmra.mrb[0].mxu0 %v117
  %v213 = vpop.f32.mrb[0].mxu0
  %v214 = vadd.f32 0.0, %v213
  %v215 = vpop.f32.mrb[0].mxu0
  %v216 = vpop.f32.mrb[0].mxu0
  %v217 = vadd.f32 0.0, %v216
  %v218 = vpop.f32.mrb[0].mxu0
  %219 = vdwg.mxu0
  %v220 = vld [vmem:[%s2] sm:$0x1]
  %v222 = vlaneseq
  %v223 = vshrl.u32 %v222, 7
  %v224 = vsub.s32 0, %v223
  %v225 = vrot.slane %v220, %v224
  %v227 = vmul.f32 %v158, %v225
  %v228 = vmul.f32 %v161, %v225
  %v229 = vmul.f32 %v166, %v225
  %v230 = vmul.f32 %v169, %v225
  %v231 = vmul.f32 %v174, %v225
  %v232 = vmul.f32 %v177, %v225
  %v233 = vmul.f32 %v182, %v225
  %v234 = vmul.f32 %v185, %v225
  %v235 = vmul.f32 %v190, %v225
  %v236 = vmul.f32 %v193, %v225
  %v237 = vmul.f32 %v198, %v225
  %v238 = vmul.f32 %v201, %v225
  %v239 = vmul.f32 %v206, %v225
  %v240 = vmul.f32 %v209, %v225
  %v241 = vmul.f32 %v214, %v225
  %v242 = vmul.f32 %v217, %v225
  %v243 = vld [vmem:[%s3] sm:$0x1]
  %v245 = vlaneseq
  %v246 = vshrl.u32 %v245, 7
  %v247 = vsub.s32 0, %v246
  %v248 = vrot.slane %v243, %v247
  %v250 = vadd.f32 %v227, %v248
  %v251 = vadd.f32 %v228, %v248
  %v252 = vadd.f32 %v229, %v248
  %v253 = vadd.f32 %v230, %v248
  %v254 = vadd.f32 %v231, %v248
  %v255 = vadd.f32 %v232, %v248
  %v256 = vadd.f32 %v233, %v248
  %v257 = vadd.f32 %v234, %v248
  %v258 = vadd.f32 %v235, %v248
  %v259 = vadd.f32 %v236, %v248
  %v260 = vadd.f32 %v237, %v248
  %v261 = vadd.f32 %v238, %v248
  %v262 = vadd.f32 %v239, %v248
  %v263 = vadd.f32 %v240, %v248
  %v264 = vadd.f32 %v241, %v248
  %v265 = vadd.f32 %v242, %v248
  %v266 = vmax.f32 %v250, 0.0
  %v267 = vmax.f32 %v251, 0.0
  %v268 = vmax.f32 %v252, 0.0
  %v269 = vmax.f32 %v253, 0.0
  %v270 = vmax.f32 %v254, 0.0
  %v271 = vmax.f32 %v255, 0.0
  %v272 = vmax.f32 %v256, 0.0
  %v273 = vmax.f32 %v257, 0.0
  %v274 = vmax.f32 %v258, 0.0
  %v275 = vmax.f32 %v259, 0.0
  %v276 = vmax.f32 %v260, 0.0
  %v277 = vmax.f32 %v261, 0.0
  %v278 = vmax.f32 %v262, 0.0
  %v279 = vmax.f32 %v263, 0.0
  %v280 = vmax.f32 %v264, 0.0
  %v281 = vmax.f32 %v265, 0.0
  %v282 = vpack.c.bf16 %v267, %v266
  %v283 = vpack.c.bf16 %v269, %v268
  %v284 = vpack.c.bf16 %v271, %v270
  %v285 = vpack.c.bf16 %v273, %v272
  %v286 = vpack.c.bf16 %v275, %v274
  %v287 = vpack.c.bf16 %v277, %v276
  %v288 = vpack.c.bf16 %v279, %v278
  %v289 = vpack.c.bf16 %v281, %v280
  %v298 = vunpack.c.l.b16 %v282
  %v299 = vunpack.c.h.b16 %v282
  %v300 = vunpack.c.l.b16 %v283
  %v301 = vunpack.c.h.b16 %v283
  %v302 = vunpack.c.l.b16 %v284
  %v303 = vunpack.c.h.b16 %v284
  %v304 = vunpack.c.l.b16 %v285
  %v305 = vunpack.c.h.b16 %v285
  %v306 = vunpack.c.l.b16 %v286
  %v307 = vunpack.c.h.b16 %v286
  %v308 = vunpack.c.l.b16 %v287
  %v309 = vunpack.c.h.b16 %v287
  %v310 = vunpack.c.l.b16 %v288
  %v311 = vunpack.c.h.b16 %v288
  %v312 = vunpack.c.l.b16 %v289
  %v313 = vunpack.c.h.b16 %v289
  %v314 = vpack.c.b16 %v298, %v298
  %v315 = vpack.c.b16 %v299, %v299
  %v316 = vpack.c.b16 %v300, %v300
  %v317 = vpack.c.b16 %v301, %v301
  %v318 = vpack.c.b16 %v302, %v302
  %v319 = vpack.c.b16 %v303, %v303
  %v320 = vpack.c.b16 %v304, %v304
  %v321 = vpack.c.b16 %v305, %v305
  %v322 = vpack.c.b16 %v306, %v306
  %v323 = vpack.c.b16 %v307, %v307
  %v324 = vpack.c.b16 %v308, %v308
  %v325 = vpack.c.b16 %v309, %v309
  %v326 = vpack.c.b16 %v310, %v310
  %v327 = vpack.c.b16 %v311, %v311
  %v328 = vpack.c.b16 %v312, %v312
  %v329 = vpack.c.b16 %v313, %v313
  %vm346 = vcmask 60416
  %347 = vst.msk [vmem:[%s4] sm:$0xf] %vm346, %v314
  %348 = vst.msk [vmem:[%s4 + $0x4] sm:$0xf] %vm346, %v315
  %349 = vst.msk [vmem:[%s4 + $0x8] sm:$0xf] %vm346, %v316
  %350 = vst.msk [vmem:[%s4 + $0xc] sm:$0xf] %vm346, %v317
  %351 = vst.msk [vmem:[%s4 + $0x10] sm:$0xf] %vm346, %v318
  %352 = vst.msk [vmem:[%s4 + $0x14] sm:$0xf] %vm346, %v319
  %353 = vst.msk [vmem:[%s4 + $0x18] sm:$0xf] %vm346, %v320
  %354 = vst.msk [vmem:[%s4 + $0x1c] sm:$0xf] %vm346, %v321
  %355 = vst.msk [vmem:[%s4 + $0x20] sm:$0xf] %vm346, %v322
  %356 = vst.msk [vmem:[%s4 + $0x24] sm:$0xf] %vm346, %v323
  %357 = vst.msk [vmem:[%s4 + $0x28] sm:$0xf] %vm346, %v324
  %358 = vst.msk [vmem:[%s4 + $0x2c] sm:$0xf] %vm346, %v325
  %359 = vst.msk [vmem:[%s4 + $0x30] sm:$0xf] %vm346, %v326
  %360 = vst.msk [vmem:[%s4 + $0x34] sm:$0xf] %vm346, %v327
  %361 = vst.msk [vmem:[%s4 + $0x38] sm:$0xf] %vm346, %v328
  %362 = vst.msk [vmem:[%s4 + $0x3c] sm:$0xf] %vm346, %v329
  // Predicated region
  $region18: #{preact_basic_block_forward.2} parent=0 // pred_check
    _
  $region19: #{preact_basic_block_forward.2} parent=0 // pred_check_branch
    %364 = sbr.rel (0) target = $region21
  $region20: #{preact_basic_block_forward.2} parent=0 // pred_region
    _
  $region21: #{preact_basic_block_forward.2} parent=0 // pred_fallthru
    _
  // Predicated region
  $region22: #{preact_basic_block_forward.2} parent=0 // pred_check
    _
  $region23: #{preact_basic_block_forward.2} parent=0 // pred_check_branch
    %366 = sbr.rel (0) target = $region25
  $region24: #{preact_basic_block_forward.2} parent=0 // pred_region
    _
  $region25: #{preact_basic_block_forward.2} parent=0 // pred_fallthru
    _

// kernel: preact_basic_block_forward.3
$region0: #{preact_basic_block_forward.3}
  #allocation0 [shape = 'u32[]', space=smem, size = 0x4, offset = 0x4, fixed_abs, tag = 'smem constant byte address 0x4 - core index']
  #allocation1 [shape = 'u32[144,128]{1,0:T(1,128)}', space=vmem, size = 0x12000, scoped, tag = 'internal scratch']
  %s0 = inlined_call_operand.vmem [shape: bf16[128,72], index: 0, kind: input, shape index: {}]
  %s1 = inlined_call_operand.vmem [shape: bf16[128,4], index: 1, kind: input, shape index: {}]
  %s2 = inlined_call_operand.vmem [shape: bf16[72,8], index: 2, kind: input, shape index: {}]
  %s3 = inlined_call_operand.vmem [shape: bf16[4,8], index: 3, kind: input, shape index: {}]
  %s4 = inlined_call_operand.vmem [shape: f32[128,8], index: 4, kind: output, shape index: {}]
  %s5 = sld [smem:[#allocation0]]
  $region26: #{preact_basic_block_forward.3} parent=0
    _
  %s7 = ssub.s32 1, %s5
  %s8 = scalar_select 0, %s7, %s5
  // Predicated region
  $region2: #{preact_basic_block_forward.3} parent=0 // pred_check
    _
  $region3: #{preact_basic_block_forward.3} parent=0 // pred_check_branch
    %10 = sbr.rel (0) target = $region5
  $region4: #{preact_basic_block_forward.3} parent=0 // pred_region
    _
  $region5: #{preact_basic_block_forward.3} parent=0 // pred_fallthru
    _
  // Predicated region
  $region6: #{preact_basic_block_forward.3} parent=0 // pred_check
    _
  $region7: #{preact_basic_block_forward.3} parent=0 // pred_check_branch
    %12 = sbr.rel (0) target = $region9
  $region8: #{preact_basic_block_forward.3} parent=0 // pred_region
    _
  $region9: #{preact_basic_block_forward.3} parent=0 // pred_fallthru
    _
  // Predicated region
  $region10: #{preact_basic_block_forward.3} parent=0 // pred_check
    _
  $region11: #{preact_basic_block_forward.3} parent=0 // pred_check_branch
    %14 = sbr.rel (0) target = $region13
  $region12: #{preact_basic_block_forward.3} parent=0 // pred_region
    _
  $region13: #{preact_basic_block_forward.3} parent=0 // pred_fallthru
    _
  // Predicated region
  $region14: #{preact_basic_block_forward.3} parent=0 // pred_check
    _
  $region15: #{preact_basic_block_forward.3} parent=0 // pred_check_branch
    %16 = sbr.rel (0) target = $region17
  $region16: #{preact_basic_block_forward.3} parent=0 // pred_region
    _
  $region17: #{preact_basic_block_forward.3} parent=0 // pred_fallthru
    _
  %v18 = vld [vmem:[%s0] sm:$0xf]
  %v19 = vld [vmem:[%s0 + $0x4] sm:$0xf]
  %v20 = vld [vmem:[%s0 + $0x8] sm:$0xf]
  %v21 = vld [vmem:[%s0 + $0xc] sm:$0xf]
  %v22 = vld [vmem:[%s0 + $0x10] sm:$0xf]
  %v23 = vld [vmem:[%s0 + $0x14] sm:$0xf]
  %v24 = vld [vmem:[%s0 + $0x18] sm:$0xf]
  %v25 = vld [vmem:[%s0 + $0x1c] sm:$0xf]
  %v26 = vld [vmem:[%s0 + $0x20] sm:$0xf]
  %v27 = vld [vmem:[%s0 + $0x24] sm:$0xf]
  %v28 = vld [vmem:[%s0 + $0x28] sm:$0xf]
  %v29 = vld [vmem:[%s0 + $0x2c] sm:$0xf]
  %v30 = vld [vmem:[%s0 + $0x30] sm:$0xf]
  %v31 = vld [vmem:[%s0 + $0x34] sm:$0xf]
  %v32 = vld [vmem:[%s0 + $0x38] sm:$0xf]
  %v33 = vld [vmem:[%s0 + $0x3c] sm:$0xf]
  %v34 = vld [vmem:[%s2] sm:$0xf]
  %v35 = vld [vmem:[%s2 + $0x4] sm:$0xf]
  %v36 = vld [vmem:[%s2 + $0x8] sm:$0xf]
  %v37 = vld [vmem:[%s2 + $0xc] sm:$0xf]
  %v38 = vld [vmem:[%s2 + $0x10] sm:$0xf]
  %v39 = vld [vmem:[%s2 + $0x14] sm:$0xf]
  %v40 = vld [vmem:[%s2 + $0x18] sm:$0xf]
  %v41 = vld [vmem:[%s2 + $0x1c] sm:$0xf]
  %v42 = vld [vmem:[%s2 + $0x20] sm:$0xf]
  %v43 = vld [vmem:[%s1] sm:$0xf]
  %v44 = vld [vmem:[%s1 + $0x4] sm:$0xf]
  %v45 = vld [vmem:[%s1 + $0x8] sm:$0xf]
  %v46 = vld [vmem:[%s1 + $0xc] sm:$0xf]
  %v47 = vld [vmem:[%s1 + $0x10] sm:$0xf]
  %v48 = vld [vmem:[%s1 + $0x14] sm:$0xf]
  %v49 = vld [vmem:[%s1 + $0x18] sm:$0xf]
  %v50 = vld [vmem:[%s1 + $0x1c] sm:$0xf]
  %v51 = vld [vmem:[%s1 + $0x20] sm:$0xf]
  %v52 = vld [vmem:[%s1 + $0x24] sm:$0xf]
  %v53 = vld [vmem:[%s1 + $0x28] sm:$0xf]
  %v54 = vld [vmem:[%s1 + $0x2c] sm:$0xf]
  %v55 = vld [vmem:[%s1 + $0x30] sm:$0xf]
  %v56 = vld [vmem:[%s1 + $0x34] sm:$0xf]
  %v57 = vld [vmem:[%s1 + $0x38] sm:$0xf]
  %v58 = vld [vmem:[%s1 + $0x3c] sm:$0xf]
  %v59 = vld [vmem:[%s3] sm:$0x3]
  %v76 = vunpack.c.l.b16 %v43
  %v77 = vunpack.c.l.b16 %v44
  %v78 = vunpack.c.l.b16 %v45
  %v79 = vunpack.c.l.b16 %v46
  %v80 = vunpack.c.l.b16 %v47
  %v81 = vunpack.c.l.b16 %v48
  %v82 = vunpack.c.l.b16 %v49
  %v83 = vunpack.c.l.b16 %v50
  %v84 = vunpack.c.l.b16 %v51
  %v85 = vunpack.c.l.b16 %v52
  %v86 = vunpack.c.l.b16 %v53
  %v87 = vunpack.c.l.b16 %v54
  %v88 = vunpack.c.l.b16 %v55
  %v89 = vunpack.c.l.b16 %v56
  %v90 = vunpack.c.l.b16 %v57
  %v91 = vunpack.c.l.b16 %v58
  %v92 = vpack.c.b16 %v77, %v76
  %v93 = vpack.c.b16 %v79, %v78
  %v94 = vpack.c.b16 %v81, %v80
  %v95 = vpack.c.b16 %v83, %v82
  %v96 = vpack.c.b16 %v85, %v84
  %v97 = vpack.c.b16 %v87, %v86
  %v98 = vpack.c.b16 %v89, %v88
  %v99 = vpack.c.b16 %v91, %v90
  %vm100 = vcmask 31744
  %v102 = vsel %vm100, %v92, 0
  %v105 = vsel %vm100, %v93, 0
  %v108 = vsel %vm100, %v94, 0
  %v111 = vsel %vm100, %v95, 0
  %v114 = vsel %vm100, %v96, 0
  %v117 = vsel %vm100, %v97, 0
  %v120 = vsel %vm100, %v98, 0
  %v123 = vsel %vm100, %v99, 0
  %vm125 = vcmask 1041408
  %v127 = vsel %vm125, %v59, 0
  %129 = vmatprep.subr.bf16.mxu0 0
  %130 = vmatpush1.bf16.msra.mxu0 %v127
  %131 = vmatprep.subr.bf16.mxu0 0
  %132 = vmatpush1.bf16.msra.mxu0 0
  %133 = vmatprep.subr.bf16.mxu0 0
  %134 = vmatpush1.bf16.msra.mxu0 0
  %135 = vmatprep.subr.bf16.mxu0 0
  %136 = vmatpush1.bf16.msra.mxu0 0
  %137 = vmatprep.subr.bf16.mxu0 0
  %138 = vmatpush1.bf16.msra.mxu0 0
  %139 = vmatprep.subr.bf16.mxu0 0
  %140 = vmatpush1.bf16.msra.mxu0 0
  %141 = vmatprep.subr.bf16.mxu0 0
  %142 = vmatpush1.bf16.msra.mxu0 0
  %143 = vmatprep.subr.bf16.mxu0 0
  %144 = vmatpush1.bf16.msra.mxu0 0
  %145 = vmatprep.subr.bf16.mxu0 0
  %146 = vmatpush1.bf16.msra.mxu0 0
  %147 = vmatprep.subr.bf16.mxu0 0
  %148 = vmatpush1.bf16.msra.mxu0 0
  %149 = vmatprep.subr.bf16.mxu0 0
  %150 = vmatpush1.bf16.msra.mxu0 0
  %151 = vmatprep.subr.bf16.mxu0 0
  %152 = vmatpush1.bf16.msra.mxu0 0
  %153 = vmatprep.subr.bf16.mxu0 0
  %154 = vmatpush1.bf16.msra.mxu0 0
  %155 = vmatprep.subr.bf16.mxu0 0
  %156 = vmatpush1.bf16.msra.mxu0 0
  %157 = vmatprep.subr.bf16.mxu0 0
  %158 = vmatpush1.bf16.msra.mxu0 0
  %159 = vmatprep.subr.bf16.mxu0 0
  %160 = vmatpush1.bf16.msra.mxu0 0
  %161 = vmatprep.mubr.bf16.mxu0 0
  %162 = vmatmul.mubr.bf16.gmra.mrb[0].mxu0 %v102
  %v163 = vpop.f32.mrb[0].mxu0
  %v164 = vadd.f32 0.0, %v163
  %v165 = vpop.f32.mrb[0].mxu0
  %v166 = vpop.f32.mrb[0].mxu0
  %v167 = vadd.f32 0.0, %v166
  %v168 = vpop.f32.mrb[0].mxu0
  %169 = vmatprep.mubr.bf16.mxu0 0
  %170 = vmatmul.mubr.bf16.gmra.mrb[0].mxu0 %v105
  %v171 = vpop.f32.mrb[0].mxu0
  %v172 = vadd.f32 0.0, %v171
  %v173 = vpop.f32.mrb[0].mxu0
  %v174 = vpop.f32.mrb[0].mxu0
  %v175 = vadd.f32 0.0, %v174
  %v176 = vpop.f32.mrb[0].mxu0
  %177 = vmatprep.mubr.bf16.mxu0 0
  %178 = vmatmul.mubr.bf16.gmra.mrb[0].mxu0 %v108
  %v179 = vpop.f32.mrb[0].mxu0
  %v180 = vadd.f32 0.0, %v179
  %v181 = vpop.f32.mrb[0].mxu0
  %v182 = vpop.f32.mrb[0].mxu0
  %v183 = vadd.f32 0.0, %v182
  %v184 = vpop.f32.mrb[0].mxu0
  %185 = vmatprep.mubr.bf16.mxu0 0
  %186 = vmatmul.mubr.bf16.gmra.mrb[0].mxu0 %v111
  %v187 = vpop.f32.mrb[0].mxu0
  %v188 = vadd.f32 0.0, %v187
  %v189 = vpop.f32.mrb[0].mxu0
  %v190 = vpop.f32.mrb[0].mxu0
  %v191 = vadd.f32 0.0, %v190
  %v192 = vpop.f32.mrb[0].mxu0
  %193 = vmatprep.mubr.bf16.mxu0 0
  %194 = vmatmul.mubr.bf16.gmra.mrb[0].mxu0 %v114
  %v195 = vpop.f32.mrb[0].mxu0
  %v196 = vadd.f32 0.0, %v195
  %v197 = vpop.f32.mrb[0].mxu0
  %v198 = vpop.f32.mrb[0].mxu0
  %v199 = vadd.f32 0.0, %v198
  %v200 = vpop.f32.mrb[0].mxu0
  %201 = vmatprep.mubr.bf16.mxu0 0
  %202 = vmatmul.mubr.bf16.gmra.mrb[0].mxu0 %v117
  %v203 = vpop.f32.mrb[0].mxu0
  %v204 = vadd.f32 0.0, %v203
  %v205 = vpop.f32.mrb[0].mxu0
  %v206 = vpop.f32.mrb[0].mxu0
  %v207 = vadd.f32 0.0, %v206
  %v208 = vpop.f32.mrb[0].mxu0
  %209 = vmatprep.mubr.bf16.mxu0 0
  %210 = vmatmul.mubr.bf16.gmra.mrb[0].mxu0 %v120
  %v211 = vpop.f32.mrb[0].mxu0
  %v212 = vadd.f32 0.0, %v211
  %v213 = vpop.f32.mrb[0].mxu0
  %v214 = vpop.f32.mrb[0].mxu0
  %v215 = vadd.f32 0.0, %v214
  %v216 = vpop.f32.mrb[0].mxu0
  %217 = vmatprep.mubr.bf16.mxu0 0
  %218 = vmatmul.mubr.bf16.gmra.mrb[0].mxu0 %v123
  %v219 = vpop.f32.mrb[0].mxu0
  %v220 = vadd.f32 0.0, %v219
  %v221 = vpop.f32.mrb[0].mxu0
  %v222 = vpop.f32.mrb[0].mxu0
  %v223 = vadd.f32 0.0, %v222
  %v224 = vpop.f32.mrb[0].mxu0
  %225 = vdwg.mxu0
  %v242 = vunpack.c.l.b16 %v18
  %v243 = vunpack.c.l.b16 %v19
  %v244 = vunpack.c.l.b16 %v20
  %v245 = vunpack.c.l.b16 %v21
  %v246 = vunpack.c.l.b16 %v22
  %v247 = vunpack.c.l.b16 %v23
  %v248 = vunpack.c.l.b16 %v24
  %v249 = vunpack.c.l.b16 %v25
  %v250 = vunpack.c.l.b16 %v26
  %v251 = vunpack.c.l.b16 %v27
  %v252 = vunpack.c.l.b16 %v28
  %v253 = vunpack.c.l.b16 %v29
  %v254 = vunpack.c.l.b16 %v30
  %v255 = vunpack.c.l.b16 %v31
  %v256 = vunpack.c.l.b16 %v32
  %v257 = vunpack.c.l.b16 %v33
  %v258 = vpack.c.b16 %v243, %v242
  %v259 = vpack.c.b16 %v245, %v244
  %v260 = vpack.c.b16 %v247, %v246
  %v261 = vpack.c.b16 %v249, %v248
  %v262 = vpack.c.b16 %v251, %v250
  %v263 = vpack.c.b16 %v253, %v252
  %v264 = vpack.c.b16 %v255, %v254
  %v265 = vpack.c.b16 %v257, %v256
  %v275 = vunpack.c.l.b16 %v34
  %v276 = vunpack.c.l.b16 %v35
  %v277 = vunpack.c.l.b16 %v36
  %v278 = vunpack.c.l.b16 %v37
  %v279 = vunpack.c.l.b16 %v38
  %v280 = vunpack.c.l.b16 %v39
  %v281 = vunpack.c.l.b16 %v40
  %v282 = vunpack.c.l.b16 %v41
  %v283 = vunpack.c.l.b16 %v42
  %v284 = vpack.c.b16 %v276, %v275
  %v285 = vpack.c.b16 %v278, %v277
  %v286 = vpack.c.b16 %v280, %v279
  %v287 = vpack.c.b16 %v282, %v281
  %v288 = vpack.c.b16 %v283, %v283
  %vm293 = vcmask 588800
  %v295 = vsel %vm293, %v258, 0
  %v298 = vsel %vm293, %v259, 0
  %v301 = vsel %vm293, %v260, 0
  %v304 = vsel %vm293, %v261, 0
  %v307 = vsel %vm293, %v262, 0
  %v310 = vsel %vm293, %v263, 0
  %v313 = vsel %vm293, %v264, 0
  %v316 = vsel %vm293, %v265, 0
  %vm318 = vcmask 1043456
  %v320 = vsel %vm318, %v288, 0
  %322 = vmatprep.subr.bf16.mxu0 0
  %323 = vmatpush1.bf16.msra.mxu0 %v284
  %324 = vmatprep.subr.bf16.mxu0 0
  %325 = vmatpush1.bf16.msra.mxu0 %v285
  %326 = vmatprep.subr.bf16.mxu0 0
  %327 = vmatpush1.bf16.msra.mxu0 %v286
  %328 = vmatprep.subr.bf16.mxu0 0
  %329 = vmatpush1.bf16.msra.mxu0 %v287
  %330 = vmatprep.subr.bf16.mxu0 0
  %331 = vmatpush1.bf16.msra.mxu0 %v320
  %332 = vmatprep.subr.bf16.mxu0 0
  %333 = vmatpush1.bf16.msra.mxu0 0
  %334 = vmatprep.subr.bf16.mxu0 0
  %335 = vmatpush1.bf16.msra.mxu0 0
  %336 = vmatprep.subr.bf16.mxu0 0
  %337 = vmatpush1.bf16.msra.mxu0 0
  %338 = vmatprep.subr.bf16.mxu0 0
  %339 = vmatpush1.bf16.msra.mxu0 0
  %340 = vmatprep.subr.bf16.mxu0 0
  %341 = vmatpush1.bf16.msra.mxu0 0
  %342 = vmatprep.subr.bf16.mxu0 0
  %343 = vmatpush1.bf16.msra.mxu0 0
  %344 = vmatprep.subr.bf16.mxu0 0
  %345 = vmatpush1.bf16.msra.mxu0 0
  %346 = vmatprep.subr.bf16.mxu0 0
  %347 = vmatpush1.bf16.msra.mxu0 0
  %348 = vmatprep.subr.bf16.mxu0 0
  %349 = vmatpush1.bf16.msra.mxu0 0
  %350 = vmatprep.subr.bf16.mxu0 0
  %351 = vmatpush1.bf16.msra.mxu0 0
  %352 = vmatprep.subr.bf16.mxu0 0
  %353 = vmatpush1.bf16.msra.mxu0 0
  %354 = vmatprep.mubr.bf16.mxu0 0
  %355 = vmatmul.mubr.bf16.gmra.mrb[0].mxu0 %v295
  %v356 = vpop.f32.mrb[0].mxu0
  %v357 = vadd.f32 %v164, %v356
  %v358 = vpop.f32.mrb[0].mxu0
  %v359 = vpop.f32.mrb[0].mxu0
  %v360 = vadd.f32 %v167, %v359
  %v361 = vpop.f32.mrb[0].mxu0
  %362 = vmatprep.mubr.bf16.mxu0 0
  %363 = vmatmul.mubr.bf16.gmra.mrb[0].mxu0 %v298
  %v364 = vpop.f32.mrb[0].mxu0
  %v365 = vadd.f32 %v172, %v364
  %v366 = vpop.f32.mrb[0].mxu0
  %v367 = vpop.f32.mrb[0].mxu0
  %v368 = vadd.f32 %v175, %v367
  %v369 = vpop.f32.mrb[0].mxu0
  %370 = vmatprep.mubr.bf16.mxu0 0
  %371 = vmatmul.mubr.bf16.gmra.mrb[0].mxu0 %v301
  %v372 = vpop.f32.mrb[0].mxu0
  %v373 = vadd.f32 %v180, %v372
  %v374 = vpop.f32.mrb[0].mxu0
  %v375 = vpop.f32.mrb[0].mxu0
  %v376 = vadd.f32 %v183, %v375
  %v377 = vpop.f32.mrb[0].mxu0
  %378 = vmatprep.mubr.bf16.mxu0 0
  %379 = vmatmul.mubr.bf16.gmra.mrb[0].mxu0 %v304
  %v380 = vpop.f32.mrb[0].mxu0
  %v381 = vadd.f32 %v188, %v380
  %v382 = vpop.f32.mrb[0].mxu0
  %v383 = vpop.f32.mrb[0].mxu0
  %v384 = vadd.f32 %v191, %v383
  %v385 = vpop.f32.mrb[0].mxu0
  %386 = vmatprep.mubr.bf16.mxu0 0
  %387 = vmatmul.mubr.bf16.gmra.mrb[0].mxu0 %v307
  %v388 = vpop.f32.mrb[0].mxu0
  %v389 = vadd.f32 %v196, %v388
  %v390 = vpop.f32.mrb[0].mxu0
  %v391 = vpop.f32.mrb[0].mxu0
  %v392 = vadd.f32 %v199, %v391
  %v393 = vpop.f32.mrb[0].mxu0
  %394 = vmatprep.mubr.bf16.mxu0 0
  %395 = vmatmul.mubr.bf16.gmra.mrb[0].mxu0 %v310
  %v396 = vpop.f32.mrb[0].mxu0
  %v397 = vadd.f32 %v204, %v396
  %v398 = vpop.f32.mrb[0].mxu0
  %v399 = vpop.f32.mrb[0].mxu0
  %v400 = vadd.f32 %v207, %v399
  %v401 = vpop.f32.mrb[0].mxu0
  %402 = vmatprep.mubr.bf16.mxu0 0
  %403 = vmatmul.mubr.bf16.gmra.mrb[0].mxu0 %v313
  %v404 = vpop.f32.mrb[0].mxu0
  %v405 = vadd.f32 %v212, %v404
  %v406 = vpop.f32.mrb[0].mxu0
  %v407 = vpop.f32.mrb[0].mxu0
  %v408 = vadd.f32 %v215, %v407
  %v409 = vpop.f32.mrb[0].mxu0
  %410 = vmatprep.mubr.bf16.mxu0 0
  %411 = vmatmul.mubr.bf16.gmra.mrb[0].mxu0 %v316
  %v412 = vpop.f32.mrb[0].mxu0
  %v413 = vadd.f32 %v220, %v412
  %v414 = vpop.f32.mrb[0].mxu0
  %v415 = vpop.f32.mrb[0].mxu0
  %v416 = vadd.f32 %v223, %v415
  %v417 = vpop.f32.mrb[0].mxu0
  %418 = vdwg.mxu0
  %vm419 = vcmask 64512
  %420 = vst.msk [vmem:[%s4] sm:$0xff] %vm419, %v357
  %421 = vst.msk [vmem:[%s4 + $0x8] sm:$0xff] %vm419, %v360
  %422 = vst.msk [vmem:[%s4 + $0x10] sm:$0xff] %vm419, %v365
  %423 = vst.msk [vmem:[%s4 + $0x18] sm:$0xff] %vm419, %v368
  %424 = vst.msk [vmem:[%s4 + $0x20] sm:$0xff] %vm419, %v373
  %425 = vst.msk [vmem:[%s4 + $0x28] sm:$0xff] %vm419, %v376
  %426 = vst.msk [vmem:[%s4 + $0x30] sm:$0xff] %vm419, %v381
  %427 = vst.msk [vmem:[%s4 + $0x38] sm:$0xff] %vm419, %v384
  %428 = vst.msk [vmem:[%s4 + $0x40] sm:$0xff] %vm419, %v389
  %429 = vst.msk [vmem:[%s4 + $0x48] sm:$0xff] %vm419, %v392
  %430 = vst.msk [vmem:[%s4 + $0x50] sm:$0xff] %vm419, %v397
  %431 = vst.msk [vmem:[%s4 + $0x58] sm:$0xff] %vm419, %v400
  %432 = vst.msk [vmem:[%s4 + $0x60] sm:$0xff] %vm419, %v405
  %433 = vst.msk [vmem:[%s4 + $0x68] sm:$0xff] %vm419, %v408
  %434 = vst.msk [vmem:[%s4 + $0x70] sm:$0xff] %vm419, %v413
  %435 = vst.msk [vmem:[%s4 + $0x78] sm:$0xff] %vm419, %v416
  // Predicated region
  $region18: #{preact_basic_block_forward.3} parent=0 // pred_check
    _
  $region19: #{preact_basic_block_forward.3} parent=0 // pred_check_branch
    %437 = sbr.rel (0) target = $region21
  $region20: #{preact_basic_block_forward.3} parent=0 // pred_region
    _
  $region21: #{preact_basic_block_forward.3} parent=0 // pred_fallthru
    _
  // Predicated region
  $region22: #{preact_basic_block_forward.3} parent=0 // pred_check
    _
  $region23: #{preact_basic_block_forward.3} parent=0 // pred_check_branch
    %439 = sbr.rel (0) target = $region25
  $region24: #{preact_basic_block_forward.3} parent=0 // pred_region
    _
  $region25: #{preact_basic_block_forward.3} parent=0 // pred_fallthru
    _

</llo_original>
